<compile_context>
chip_gen: v6e
topology: v6e:2x2x1
jax: 0.10.0
libtpu: 0.0.40
codegen_flags: <defaults>
</compile_context>

<pallas_src>
import functools

import jax
import jax.numpy as jnp
from jax.experimental import pallas as pl
from jax.experimental.pallas import tpu as pltpu


def _round_up(x, m):
    return ((x + m - 1) // m) * m


def _bce_mean_kernel(p_ref, t_ref, out_ref, acc_ref, *,
                     total_rows, tile_rows, blocks_per_core, neg_inv_n,
                     may_need_mask):
    c = pl.program_id(0)                      # megacore half ("parallel")
    i = pl.program_id(1)                      # row tile within half ("arbitrary")
    block = c * blocks_per_core + i           # logical (unclamped) row-tile index

    # Zero this core's resident accumulator on its first step.
    @pl.when(i == 0)
    def _init():
        acc_ref[...] = jnp.zeros_like(acc_ref)

    p = p_ref[...].astype(jnp.float32)                  # (tile_rows, F)
    # Drop the 2 aux leading columns of y_true in-register (no extra HBM pass).
    t = t_ref[...].astype(jnp.float32)[:, 2:]           # (tile_rows, F)

    # PyTorch BCELoss clamps the log terms at -100.  The per-element negation
    # is folded into the final scale: accumulate +(log1mp + t*(logp - log1mp)).
    log_p = jnp.maximum(jnp.log(p), -100.0)
    log_1mp = jnp.maximum(jnp.log(1.0 - p), -100.0)
    term = log_1mp + t * (log_p - log_1mp)

    def _accum(x):
        # Sublane-only reduce per step; lane/XLU reduce deferred to finalize.
        acc_ref[...] += jnp.sum(x, axis=0, keepdims=True)

    if may_need_mask:
        tile_end = (block + 1) * tile_rows

        @pl.when(tile_end <= total_rows)          # interior tile: fast path
        def _full_tile():
            _accum(term)

        @pl.when(tile_end > total_rows)           # ragged real or phantom tile
        def _ragged_tile():
            row = (jax.lax.broadcasted_iota(jnp.int32, term.shape, 0)
                   + block * tile_rows)
            _accum(jnp.where(row < total_rows, term, 0.0))
    else:
        _accum(term)

    # Commit this core's partial (negated + scaled by the GLOBAL 1/(B*F)) once.
    @pl.when(i == pl.num_programs(1) - 1)
    def _finalize():
        out_ref[...] = jnp.sum(acc_ref[...], keepdims=True) * neg_inv_n


def _choose_tile_rows(n_rows, f_pred, f_true, itemsize_pred, itemsize_true):
    """Largest row tile fitting a double-buffered VMEM budget (lane-padded)."""
    lanes_pred = _round_up(f_pred, 128)
    lanes_true = _round_up(f_true, 128)
    bytes_per_row = lanes_pred * itemsize_pred + lanes_true * itemsize_true
    budget = 12 * 1024 * 1024                  # double-buffered input budget
    tile = budget // max(2 * bytes_per_row, 1)
    tile = max(8, min(int(tile), 4096))
    tile = (tile // 8) * 8                     # sublane multiple
    # Don't exceed what one core needs (keeps both v7x cores busy).
    rows_per_core = _round_up(max((n_rows + 1) // 2, 1), 8)
    return max(8, min(tile, rows_per_core))


def nan_regression_loss(y_pred, y_true, mask=None, *, tile_rows=None):
    """JAX/Pallas equivalent of NanRegressionLoss.forward."""
    del mask  # unused in the reference module (kept for API parity)
    B, F = y_pred.shape
    Bt, F_true = y_true.shape
    assert Bt == B and F_true == F + 2, (y_pred.shape, y_true.shape)

    isize_p = jnp.dtype(y_pred.dtype).itemsize
    isize_t = jnp.dtype(y_true.dtype).itemsize
    if tile_rows is None:
        tile_rows = _choose_tile_rows(B, F, F_true, isize_p, isize_t)
    tile_rows = max(8, (int(tile_rows) // 8) * 8)

    num_blocks = -(-B // tile_rows)            # total row tiles
    blocks_per_core = -(-num_blocks // 2)      # tiles per megacore half
    grid = (2, blocks_per_core)
    # Mask is only needed for a ragged last tile or phantom (clamped) steps.
    may_need_mask = (B % tile_rows != 0) or (2 * blocks_per_core != num_blocks)

    def row_block(c, i):
        # Clamp so phantom steps re-read a valid tile; their rows are >= B and
        # therefore masked to zero in the kernel.
        return jnp.minimum(c * blocks_per_core + i, num_blocks - 1)

    # Explicit VMEM limit: double-buffered input tiles + slack (safe on v5e's
    # 16 MiB scoped default and v7x's 64 MiB-per-TC physical VMEM).
    lanes_p = _round_up(F, 128)
    lanes_t = _round_up(F_true, 128)
    tile_bytes = tile_rows * (lanes_p * isize_p + lanes_t * isize_t)
    vmem_limit = int(min(max(2 * tile_bytes + (4 << 20), 8 << 20), 32 << 20))

    kernel = functools.partial(
        _bce_mean_kernel,
        total_rows=B,
        tile_rows=tile_rows,
        blocks_per_core=blocks_per_core,
        neg_inv_n=float(-1.0 / (B * F)),
        may_need_mask=may_need_mask,
    )

    partials = pl.pallas_call(
        kernel,
        out_shape=jax.ShapeDtypeStruct((2, 1, 1), jnp.float32),
        grid_spec=pltpu.PrefetchScalarGridSpec(
            num_scalar_prefetch=0,
            grid=grid,
            in_specs=[
                pl.BlockSpec((tile_rows, F), lambda c, i: (row_block(c, i), 0)),
                pl.BlockSpec((tile_rows, F_true), lambda c, i: (row_block(c, i), 0)),
            ],
            out_specs=pl.BlockSpec((None, 1, 1), lambda c, i: (c, 0, 0)),
            scratch_shapes=[pltpu.VMEM((1, F), jnp.float32)],
        ),
        compiler_params=pltpu.CompilerParams(
            dimension_semantics=("parallel", "arbitrary"),
            vmem_limit_bytes=vmem_limit,
        ),
    )(y_pred, y_true)
    # Add the two per-core partials (each already scaled by the global 1/(B*F)).
    return jnp.sum(partials)


def _reference(y_pred, y_true):
    t = y_true[:, 2:]
    return jnp.mean(
        -(t * jnp.maximum(jnp.log(y_pred), -100.0)
          + (1.0 - t) * jnp.maximum(jnp.log(1.0 - y_pred), -100.0))
    )


if __name__ == "__main__":
    key = jax.random.PRNGKey(0)
    k1, k2, k3, k4, k5, k6, k7 = jax.random.split(key, 7)

    # Case 1: small shapes consistent with the module (y_pred (B,F), y_true (B,F+2)).
    B, F = 4, 32
    y_pred = jax.nn.sigmoid(jax.random.normal(k1, (B, F), dtype=jnp.float32))
    y_true = jax.random.bernoulli(k2, p=0.5, shape=(B, F + 2)).astype(jnp.float32)
    mask = jax.random.bernoulli(k3, p=0.5, shape=(B, F)).astype(jnp.float32)

    loss = nan_regression_loss(y_pred, y_true, mask)
    jax.block_until_ready(loss)
    ref = _reference(y_pred, y_true)
    assert jnp.allclose(loss, ref, rtol=1e-5, atol=1e-6), (loss, ref)

    # Case 2: multiple grid steps per core + ragged last tile + phantom tile
    # (exercises accumulator init/finalize, clamping, and runtime mask gating).
    B2, F2 = 20, 128
    y_pred2 = jax.nn.sigmoid(jax.random.normal(k4, (B2, F2), dtype=jnp.float32))
    y_true2 = jax.random.bernoulli(k5, p=0.5, shape=(B2, F2 + 2)).astype(jnp.float32)

    loss2 = nan_regression_loss(y_pred2, y_true2, None, tile_rows=8)
    jax.block_until_ready(loss2)
    ref2 = _reference(y_pred2, y_true2)
    assert jnp.allclose(loss2, ref2, rtol=1e-5, atol=1e-6), (loss2, ref2)

    # Case 3: bf16 targets ({0,1} is lossless) -> exercises the reduced-HBM-byte
    # path and the even megacore split with the unmasked fast path.
    B3, F3 = 256, 128
    y_pred3 = jax.nn.sigmoid(jax.random.normal(k6, (B3, F3), dtype=jnp.float32))
    y_true3 = jax.random.bernoulli(k7, p=0.5, shape=(B3, F3 + 2)).astype(jnp.bfloat16)

    loss3 = nan_regression_loss(y_pred3, y_true3, None)
    jax.block_until_ready(loss3)
    ref3 = _reference(y_pred3, y_true3.astype(jnp.float32))
    assert jnp.allclose(loss3, ref3, rtol=1e-5, atol=1e-6), (loss3, ref3)

    print("KERNEL_OK")
</pallas_src>

<mosaic_0001>
module attributes {stable_mosaic.version = 11 : i64} {
  func.func @_bce_mean_kernel(%arg0: i32, %arg1: i32, %arg2: memref<8x32xf32, #tpu.memory_space<vmem>>, %arg3: memref<8x34xf32, #tpu.memory_space<vmem>>, %arg4: memref<1x1x1xf32, #tpu.memory_space<vmem>>, %arg5: memref<1x32xf32, #tpu.memory_space<vmem>>) attributes {dimension_semantics = [#tpu.dimension_semantics<parallel>, #tpu.dimension_semantics<arbitrary>], iteration_bounds = array<i64: 2, 1>, scalar_prefetch = 0 : i64, scratch_operands = 1 : i64, tpu.core_type = #tpu.core_type<tc>, window_params = [{transform_indices = @transform_0, window_bounds = array<i64: 8, 32>}, {transform_indices = @transform_1, window_bounds = array<i64: 8, 34>}, {transform_indices = @transform_2, window_bounds = array<i64: 1, 1, 1>}]} {
    %c1_i32 = arith.constant 1 : i32
    %0 = arith.muli %arg0, %c1_i32 : i32
    %1 = arith.addi %0, %arg1 : i32
    %c0_i32 = arith.constant 0 : i32
    %2 = arith.cmpi eq, %arg1, %c0_i32 : i32
    %3 = arith.extui %2 : i1 to i32
    %c0_i32_0 = arith.constant 0 : i32
    %4 = arith.cmpi ne, %3, %c0_i32_0 : i32
    scf.if %4 {
      %cst_12 = arith.constant 0.000000e+00 : f32
      %30 = vector.broadcast %cst_12 : f32 to vector<1x32xf32>
      %c0_13 = arith.constant 0 : index
      %c0_14 = arith.constant 0 : index
      %31 = vector.load %arg5[%c0_13, %c0_14] : memref<1x32xf32, #tpu.memory_space<vmem>>, vector<1x32xf32>
      tpu.vector_store %arg5[%c0_13, %c0_14], %30 {strides = array<i32>} : memref<1x32xf32, #tpu.memory_space<vmem>>, vector<1x32xf32>,
    } else {
    }
    %c0 = arith.constant 0 : index
    %c0_1 = arith.constant 0 : index
    %5 = vector.load %arg2[%c0, %c0_1] : memref<8x32xf32, #tpu.memory_space<vmem>>, vector<8x32xf32>
    %c0_2 = arith.constant 0 : index
    %c0_3 = arith.constant 0 : index
    %6 = vector.load %arg3[%c0_2, %c0_3] : memref<8x34xf32, #tpu.memory_space<vmem>>, vector<8x34xf32>
    %7 = vector.extract_strided_slice %6 {offsets = [0, 2], sizes = [8, 32], strides = [1, 1]} : vector<8x34xf32> to vector<8x32xf32>
    %8 = math.log %5 : vector<8x32xf32>
    %cst = arith.constant -1.000000e+02 : f32
    %9 = vector.broadcast %cst : f32 to vector<8x32xf32>
    %10 = arith.maximumf %8, %9 : vector<8x32xf32>
    %cst_4 = arith.constant 1.000000e+00 : f32
    %11 = vector.broadcast %cst_4 : f32 to vector<8x32xf32>
    %12 = arith.subf %11, %5 : vector<8x32xf32>
    %13 = math.log %12 : vector<8x32xf32>
    %cst_5 = arith.constant -1.000000e+02 : f32
    %14 = vector.broadcast %cst_5 : f32 to vector<8x32xf32>
    %15 = arith.maximumf %13, %14 : vector<8x32xf32>
    %16 = arith.subf %10, %15 : vector<8x32xf32>
    %17 = arith.mulf %7, %16 : vector<8x32xf32>
    %18 = arith.addf %15, %17 : vector<8x32xf32>
    %c1_i32_6 = arith.constant 1 : i32
    %19 = arith.addi %1, %c1_i32_6 : i32
    %c8_i32 = arith.constant 8 : i32
    %20 = arith.muli %19, %c8_i32 : i32
    %c4_i32 = arith.constant 4 : i32
    %21 = arith.cmpi sle, %20, %c4_i32 : i32
    %22 = arith.extui %21 : i1 to i32
    %c0_i32_7 = arith.constant 0 : i32
    %23 = arith.cmpi ne, %22, %c0_i32_7 : i32
    scf.if %23 {
      %c0_12 = arith.constant 0 : index
      %c0_13 = arith.constant 0 : index
      %30 = vector.load %arg5[%c0_12, %c0_13] : memref<1x32xf32, #tpu.memory_space<vmem>>, vector<1x32xf32>
      %cst_14 = arith.constant dense<0.000000e+00> : vector<32xf32>
      %31 = vector.multi_reduction <add>, %18, %cst_14 [0] : vector<8x32xf32> to vector<32xf32>
      %32 = vector.shape_cast %31 : vector<32xf32> to vector<1x32xf32>
      %33 = arith.addf %30, %32 : vector<1x32xf32>
      %c0_15 = arith.constant 0 : index
      %c0_16 = arith.constant 0 : index
      %34 = vector.load %arg5[%c0_15, %c0_16] : memref<1x32xf32, #tpu.memory_space<vmem>>, vector<1x32xf32>
      tpu.vector_store %arg5[%c0_15, %c0_16], %33 {strides = array<i32>} : memref<1x32xf32, #tpu.memory_space<vmem>>, vector<1x32xf32>,
    } else {
    }
    %c4_i32_8 = arith.constant 4 : i32
    %24 = arith.cmpi sgt, %20, %c4_i32_8 : i32
    %25 = arith.extui %24 : i1 to i32
    %c0_i32_9 = arith.constant 0 : i32
    %26 = arith.cmpi ne, %25, %c0_i32_9 : i32
    scf.if %26 {
      %30 = tpu.iota {dimensions = array<i32: 0>} : vector<8x32xi32>
      %c8_i32_12 = arith.constant 8 : i32
      %31 = arith.muli %1, %c8_i32_12 : i32
      %32 = vector.broadcast %31 : i32 to vector<8x32xi32>
      %33 = arith.addi %30, %32 : vector<8x32xi32>
      %c4_i32_13 = arith.constant 4 : i32
      %34 = vector.broadcast %c4_i32_13 : i32 to vector<8x32xi32>
      %35 = arith.cmpi slt, %33, %34 : vector<8x32xi32>
      %cst_14 = arith.constant 0.000000e+00 : f32
      %36 = vector.broadcast %cst_14 : f32 to vector<8x32xf32>
      %37 = arith.select %35, %18, %36 : vector<8x32xi1>, vector<8x32xf32>
      %c0_15 = arith.constant 0 : index
      %c0_16 = arith.constant 0 : index
      %38 = vector.load %arg5[%c0_15, %c0_16] : memref<1x32xf32, #tpu.memory_space<vmem>>, vector<1x32xf32>
      %cst_17 = arith.constant dense<0.000000e+00> : vector<32xf32>
      %39 = vector.multi_reduction <add>, %37, %cst_17 [0] : vector<8x32xf32> to vector<32xf32>
      %40 = vector.shape_cast %39 : vector<32xf32> to vector<1x32xf32>
      %41 = arith.addf %38, %40 : vector<1x32xf32>
      %c0_18 = arith.constant 0 : index
      %c0_19 = arith.constant 0 : index
      %42 = vector.load %arg5[%c0_18, %c0_19] : memref<1x32xf32, #tpu.memory_space<vmem>>, vector<1x32xf32>
      tpu.vector_store %arg5[%c0_18, %c0_19], %41 {strides = array<i32>} : memref<1x32xf32, #tpu.memory_space<vmem>>, vector<1x32xf32>,
    } else {
    }
    %c0_i32_10 = arith.constant 0 : i32
    %27 = arith.cmpi eq, %arg1, %c0_i32_10 : i32
    %28 = arith.extui %27 : i1 to i32
    %c0_i32_11 = arith.constant 0 : i32
    %29 = arith.cmpi ne, %28, %c0_i32_11 : i32
    scf.if %29 {
      %c0_12 = arith.constant 0 : index
      %c0_13 = arith.constant 0 : index
      %30 = vector.load %arg5[%c0_12, %c0_13] : memref<1x32xf32, #tpu.memory_space<vmem>>, vector<1x32xf32>
      %31 = vector.shape_cast %30 : vector<1x32xf32> to vector<1x1x32xf32>
      %cst_14 = arith.constant dense<0.000000e+00> : vector<1xf32>
      %32 = vector.multi_reduction <add>, %31, %cst_14 [1, 2] : vector<1x1x32xf32> to vector<1xf32>
      %33 = vector.shape_cast %32 : vector<1xf32> to vector<1x1x1xf32>
      %34 = vector.extract %33[0, 0, 0] : f32 from vector<1x1x1xf32>
      %35 = vector.broadcast %34 : f32 to vector<1x1xf32>
      %cst_15 = arith.constant -7.812500e-03 : f32
      %36 = vector.broadcast %cst_15 : f32 to vector<1x1xf32>
      %37 = arith.mulf %35, %36 : vector<1x1xf32>
      %c0_16 = arith.constant 0 : index
      %c0_17 = arith.constant 0 : index
      %c0_18 = arith.constant 0 : index
      %38 = vector.load %arg4[%c0_16, %c0_17, %c0_18] : memref<1x1x1xf32, #tpu.memory_space<vmem>>, vector<1x1x1xf32>
      %39 = vector.shape_cast %38 : vector<1x1x1xf32> to vector<1x1xf32>
      %40 = vector.shape_cast %37 : vector<1x1xf32> to vector<1x1x1xf32>
      tpu.vector_store %arg4[%c0_16, %c0_17, %c0_18], %40 {strides = array<i32>} : memref<1x1x1xf32, #tpu.memory_space<vmem>>, vector<1x1x1xf32>,
    } else {
    }
    return
  }
  func.func @transform_0(%arg0: i32, %arg1: i32) -> (i32, i32) {
    %c1_i32 = arith.constant 1 : i32
    %0 = arith.muli %arg0, %c1_i32 : i32
    %1 = arith.addi %0, %arg1 : i32
    %c0_i32 = arith.constant 0 : i32
    %2 = arith.minsi %1, %c0_i32 : i32
    %c0_i32_0 = arith.constant 0 : i32
    %c0_i32_1 = arith.constant 0 : i32
    return %2, %c0_i32_0 : i32, i32
  }
  func.func @transform_1(%arg0: i32, %arg1: i32) -> (i32, i32) {
    %c1_i32 = arith.constant 1 : i32
    %0 = arith.muli %arg0, %c1_i32 : i32
    %1 = arith.addi %0, %arg1 : i32
    %c0_i32 = arith.constant 0 : i32
    %2 = arith.minsi %1, %c0_i32 : i32
    %c0_i32_0 = arith.constant 0 : i32
    %c0_i32_1 = arith.constant 0 : i32
    return %2, %c0_i32_0 : i32, i32
  }
  func.func @transform_2(%arg0: i32, %arg1: i32) -> (i32, i32, i32) {
    %c0_i32 = arith.constant 0 : i32
    %c0_i32_0 = arith.constant 0 : i32
    %c0_i32_1 = arith.constant 0 : i32
    return %arg0, %c0_i32, %c0_i32_0 : i32, i32, i32
  }
}

</mosaic_0001>

<llo_original>
// kernel: tpu_custom_call.1
$region0: #{tpu_custom_call.1}
  #allocation0 [shape = 'u32[]', space=smem, size = 0x4, offset = 0x4, fixed_abs, tag = 'smem constant byte address 0x4 - core index']
  #allocation1 [shape = 'u32[144,128]{1,0:T(1,128)}', space=vmem, size = 0x12000, scoped, tag = 'internal scratch']
  #allocation2 [shape = 'f32[1,32]{1,0:T(1,128)}', space=vmem, size = 0x200, scoped, tag = 'scratch operand']
  %s0 = inlined_call_operand.hbm [shape: f32[4,32], index: 0, kind: input, shape index: {}]
  %s1 = inlined_call_operand.hbm [shape: f32[4,34], index: 1, kind: input, shape index: {}]
  %s2 = inlined_call_operand.vmem [shape: f32[2,1,1], index: 2, kind: output, shape index: {}]
  %s3 = sld [smem:[#allocation0]]
  $region65: #{tpu_custom_call.1} parent=0
    _
  %s5 = ssub.s32 1, %s3
  %s6 = scalar_select 0, %s5, %s3
  $region1: #{tpu_custom_call.1} parent=0
    #allocation3 [shape = 'u8[8192]{0}', space=vmem, size = 0x2000, scoped, tag = 'input window, operand 0']
    #allocation4 [shape = 's32[2]{0}', space=sflag, size = 0x8, scoped, tag = 'scoped memory for tpu_custom_call.1']
    #allocation5 [shape = 'u8[8192]{0}', space=vmem, size = 0x2000, scoped, tag = 'input window, operand 1']
    #allocation6 [shape = 's32[2]{0}', space=sflag, size = 0x8, scoped, tag = 'scoped memory for tpu_custom_call.1']
    %7 = vsyncpa [#allocation4], 0
    %s8 = scalar_lea.sflag [#allocation4], 1
    %9 = vsyncpa %s8, 0
    %10 = vsyncpa [#allocation6], 0
    %s11 = scalar_lea.sflag [#allocation6], 1
    %12 = vsyncpa %s11, 0
    loop: start=0, step=1, limit=4
    $region2: #{tpu_custom_call.1} parent=1 // loop_pre_header
      _
    $region3: #{tpu_custom_call.1} parent=1 // loop_header
      %s14 = sphi 0, %s18
      %p15 = scmp.ge.s32.totalorder %s14, 4
      %s21 = sphi 0, %s33
      %s22 = sphi 0, %s29
      %s23 = sphi 0, %s21
      %s24 = sphi 0, %s22
      %s25 = sphi 0, %s23
      %s26 = sphi 0, %s24
      %s42 = sphi 0, %s44
      %s45 = sphi 0, %s42
      %s46 = sphi 0, %s45
      %s62 = sphi 0, %s46
      %s74 = sphi 0, %s76
      %s77 = sphi 0, %s74
      %s78 = sphi 0, %s77
      %s94 = sphi 0, %s78
      %s100 = sphi 0, %s102
      %s103 = sphi 0, %s100
      %s104 = sphi 0, %s103
      %s120 = sphi 0, %s104
    $region4: #{tpu_custom_call.1} parent=1 // loop_header_branch
      %17 = sbr.rel (%p15) target = $region8
    $region5: #{tpu_custom_call.1} parent=1 // loop_body
      %s19 = ssub.s32 %s14, 1
      %s20 = ssub.s32 %s14, 2
      %s27 = sadd.s32 1, %s22
      %p28 = scmp.ge.s32.totalorder %s27, 1
      %s29 = scalar_select %p28, 0, %s27
      %s30 = sadd.s32 1, %s21
      %s31 = scalar_select %p28, %s30, %s21
      %p32 = scmp.ge.s32.totalorder %s31, 2
      %s33 = scalar_select %p32, 0, %s31
      %s34 = sadd.s32 %s21, %s22
      %p35 = scmp.lt.s32.totalorder %s34, 0
      %s36 = scalar_select %p35, %s34, 0
      %s37 = sadd.s32 %s33, %s29
      %p38 = scmp.lt.s32.totalorder %s37, 0
      %s39 = scalar_select %p38, %s37, 0
      %s40 = ssub.s32 %s36, %s39
      %p41 = scmp.eq.s32.totalorder %s40, 0
      %s43 = sadd.s32 %s42, 1
      %s44 = scalar_select %p41, %s42, %s43
      %p47 = pneg %p41
      %p48 = scmp.eq.s32.totalorder %s14, 1
      %p49 = por %p47, %p48
      %p50 = scmp.ne.s32.totalorder %s42, %s45
      %p51 = scmp.eq.s32.totalorder %s14, 0
      %p52 = por %p50, %p51
      %p53 = scmp.ne.s32.totalorder %s42, %s45
      %p54 = scmp.eq.s32.totalorder %s19, 1
      %p55 = por %p53, %p54
      %p56 = scmp.ne.s32.totalorder %s45, %s46
      %p57 = scmp.eq.s32.totalorder %s19, 0
      %p58 = por %p56, %p57
      %p59 = scmp.ne.s32.totalorder %s45, %s46
      %p60 = scmp.eq.s32.totalorder %s20, 1
      %p61 = por %p59, %p60
      %p63 = scmp.ne.s32.totalorder %s46, %s62
      %p64 = scmp.eq.s32.totalorder %s20, 0
      %p65 = por %p63, %p64
      %s66 = sadd.s32 %s21, %s22
      %p67 = scmp.lt.s32.totalorder %s66, 0
      %s68 = scalar_select %p67, %s66, 0
      %s69 = sadd.s32 %s33, %s29
      %p70 = scmp.lt.s32.totalorder %s69, 0
      %s71 = scalar_select %p70, %s69, 0
      %s72 = ssub.s32 %s68, %s71
      %p73 = scmp.eq.s32.totalorder %s72, 0
      %s75 = sadd.s32 %s74, 1
      %s76 = scalar_select %p73, %s74, %s75
      %p79 = pneg %p73
      %p80 = scmp.eq.s32.totalorder %s14, 1
      %p81 = por %p79, %p80
      %p82 = scmp.ne.s32.totalorder %s74, %s77
      %p83 = scmp.eq.s32.totalorder %s14, 0
      %p84 = por %p82, %p83
      %p85 = scmp.ne.s32.totalorder %s74, %s77
      %p86 = scmp.eq.s32.totalorder %s19, 1
      %p87 = por %p85, %p86
      %p88 = scmp.ne.s32.totalorder %s77, %s78
      %p89 = scmp.eq.s32.totalorder %s19, 0
      %p90 = por %p88, %p89
      %p91 = scmp.ne.s32.totalorder %s77, %s78
      %p92 = scmp.eq.s32.totalorder %s20, 1
      %p93 = por %p91, %p92
      %p95 = scmp.ne.s32.totalorder %s78, %s94
      %p96 = scmp.eq.s32.totalorder %s20, 0
      %p97 = por %p95, %p96
      %s98 = ssub.s32 %s21, %s33
      %p99 = scmp.eq.s32.totalorder %s98, 0
      %s101 = sadd.s32 %s100, 1
      %s102 = scalar_select %p99, %s100, %s101
      %p105 = pneg %p99
      %p106 = scmp.eq.s32.totalorder %s14, 1
      %p107 = por %p105, %p106
      %p108 = scmp.ne.s32.totalorder %s100, %s103
      %p109 = scmp.eq.s32.totalorder %s14, 0
      %p110 = por %p108, %p109
      %p111 = scmp.ne.s32.totalorder %s100, %s103
      %p112 = scmp.eq.s32.totalorder %s19, 1
      %p113 = por %p111, %p112
      %p114 = scmp.ne.s32.totalorder %s103, %s104
      %p115 = scmp.eq.s32.totalorder %s19, 0
      %p116 = por %p114, %p115
      %p117 = scmp.ne.s32.totalorder %s103, %s104
      %p118 = scmp.eq.s32.totalorder %s20, 1
      %p119 = por %p117, %p118
      %p121 = scmp.ne.s32.totalorder %s104, %s120
      %p122 = scmp.eq.s32.totalorder %s20, 0
      %p123 = por %p121, %p122
      %p124 = scmp.le.s32.totalorder 1, %s14
      %p125 = scmp.lt.s32.totalorder %s14, 3
      %p126 = pnand %p124, %p125
      %p127 = pneg %p126
      // Predicated region
      $region9: #{tpu_custom_call.1} parent=5 // pred_check
        _
      $region10: #{tpu_custom_call.1} parent=5 // pred_check_branch
        %129 = sbr.rel (%p126) target = $region12
      $region11: #{tpu_custom_call.1} parent=5 // pred_region
        %s130 = ssub.s32 %s14, 1
      $region12: #{tpu_custom_call.1} parent=5 // pred_fallthru
        _
      %p131 = scmp.lt.s32.totalorder %s14, 2
      // Predicated region
      $region13: #{tpu_custom_call.1} parent=5 // pred_check
        %p132 = pneg %p131
      $region14: #{tpu_custom_call.1} parent=5 // pred_check_branch
        %134 = sbr.rel (%p132) target = $region16
      $region15: #{tpu_custom_call.1} parent=5 // pred_region
        // Predicated region
        $region17: #{tpu_custom_call.1} parent=15 // pred_check
          %p135 = pneg %p52
        $region18: #{tpu_custom_call.1} parent=15 // pred_check_branch
          %137 = sbr.rel (%p135) target = $region20
        $region19: #{tpu_custom_call.1} parent=15 // pred_region
          %s138 = sand.u32 %s42, 1
          %s139 = scalar_lea.sflag [#allocation4], %s138
          %s140 = sand.u32 %s42, 1
          %s141 = smul.addr %s140, 8
          %s142 = scalar_lea.vmem [#allocation3], %s141
          %s143 = sadd.s32 %s21, %s22
          %p144 = scmp.lt.s32.totalorder %s143, 0
          %s145 = scalar_select %p144, %s143, 0
          %s146 = smul.u32 2, %s145
          %s147 = ssub.s32 1, %s146
          %s148 = smul.u32 64, %s147
          %s150 = ssub.s32 128, %s148
          %151 = vsyncadd %s139, %s150
          %p152 = scmp.ne.s32.totalorder 0, %s148
          %s153 = smul.addr %s146, 64
          %s154 = scalar_lea.hbm %s0, %s153
          %s155 = smul.u32 4, %s147
          %s156 = sshll.u32 %s142, 4
          %s157 = int_to_ptr.vmem [resolvable:$true] %s156
          %s158 = sshll.u32 %s155, 4
          %162 = dma.hbm_to_vmem [thread:$0]  (%p152), %s154, %s158, %s157, %s139, 64, 64, 4
        $region20: #{tpu_custom_call.1} parent=15 // pred_fallthru
          _
        // Predicated region
        $region21: #{tpu_custom_call.1} parent=15 // pred_check
          %p163 = pneg %p84
        $region22: #{tpu_custom_call.1} parent=15 // pred_check_branch
          %165 = sbr.rel (%p163) target = $region24
        $region23: #{tpu_custom_call.1} parent=15 // pred_region
          %s166 = sand.u32 %s74, 1
          %s167 = scalar_lea.sflag [#allocation6], %s166
          %s168 = sand.u32 %s74, 1
          %s169 = smul.addr %s168, 8
          %s170 = scalar_lea.vmem [#allocation5], %s169
          %s171 = sadd.s32 %s21, %s22
          %p172 = scmp.lt.s32.totalorder %s171, 0
          %s173 = scalar_select %p172, %s171, 0
          %s174 = smul.u32 2, %s173
          %s175 = ssub.s32 1, %s174
          %s176 = smul.u32 64, %s175
          %s178 = ssub.s32 128, %s176
          %179 = vsyncadd %s167, %s178
          %p180 = scmp.ne.s32.totalorder 0, %s176
          %s181 = smul.addr %s174, 64
          %s182 = scalar_lea.hbm %s1, %s181
          %s183 = smul.u32 4, %s175
          %s184 = sshll.u32 %s170, 4
          %s185 = int_to_ptr.vmem [resolvable:$true] %s184
          %s186 = sshll.u32 %s183, 4
          %190 = dma.hbm_to_vmem [thread:$0]  (%p180), %s182, %s186, %s185, %s167, 64, 64, 4
        $region24: #{tpu_custom_call.1} parent=15 // pred_fallthru
          _
      $region16: #{tpu_custom_call.1} parent=5 // pred_fallthru
        _
      %p191 = scmp.le.s32.totalorder 1, %s14
      %p192 = scmp.lt.s32.totalorder %s14, 3
      %p193 = pnand %p191, %p192
      %p194 = pneg %p193
      // Predicated region
      $region25: #{tpu_custom_call.1} parent=5 // pred_check
        _
      $region26: #{tpu_custom_call.1} parent=5 // pred_check_branch
        %196 = sbr.rel (%p193) target = $region28
      $region27: #{tpu_custom_call.1} parent=5 // pred_region
        %s197 = ssub.s32 %s14, 1
        %s198 = sand.u32 %s45, 1
        %s199 = scalar_lea.sflag [#allocation4], %s198
        %s200 = sand.u32 %s45, 1
        %s201 = smul.addr %s200, 8
        %s202 = scalar_lea.vmem [#allocation3], %s201
        // Predicated region
        $region29: #{tpu_custom_call.1} parent=27 // pred_check
          %p203 = pneg %p58
        $region30: #{tpu_custom_call.1} parent=27 // pred_check_branch
          %205 = sbr.rel (%p203) target = $region32
        $region31: #{tpu_custom_call.1} parent=27 // pred_region
          %206 = dma.done %s199, 128
        $region32: #{tpu_custom_call.1} parent=27 // pred_fallthru
          _
        %s207 = sand.u32 %s77, 1
        %s208 = scalar_lea.sflag [#allocation6], %s207
        %s209 = sand.u32 %s77, 1
        %s210 = smul.addr %s209, 8
        %s211 = scalar_lea.vmem [#allocation5], %s210
        // Predicated region
        $region33: #{tpu_custom_call.1} parent=27 // pred_check
          %p212 = pneg %p90
        $region34: #{tpu_custom_call.1} parent=27 // pred_check_branch
          %214 = sbr.rel (%p212) target = $region36
        $region35: #{tpu_custom_call.1} parent=27 // pred_region
          %215 = dma.done %s208, 128
        $region36: #{tpu_custom_call.1} parent=27 // pred_fallthru
          _
        %s216 = sand.u32 %s45, 1
        %s217 = scalar_lea.sflag [#allocation4], %s216
        %s218 = sand.u32 %s45, 1
        %s219 = smul.addr %s218, 8
        %s220 = scalar_lea.vmem [#allocation3], %s219
        %p221 = pneg %p58
        %p222 = pneg %p55
        %s223 = sand.u32 %s77, 1
        %s224 = scalar_lea.sflag [#allocation6], %s223
        %s225 = sand.u32 %s77, 1
        %s226 = smul.addr %s225, 8
        %s227 = scalar_lea.vmem [#allocation5], %s226
        %p228 = pneg %p90
        %p229 = pneg %p87
        %p230 = pneg %p116
        %p231 = pneg %p113
        %p232 = scmp.lt.s32.totalorder %s23, 1
        %s233 = scalar_select %p232, %s23, 1
        %s234 = scalar_lea.vmem %s2, %s233
        %s235 = sadd.s32 %s23, %s24
        %p236 = scmp.lt.s32.totalorder %s235, 0
        %s237 = scalar_select %p236, %s235, 0
        %s238 = smul.u32 2, %s237
        %s239 = ssub.s32 1, %s238
        %s240 = smul.u32 64, %s239
        %s241 = sadd.s32 %s23, %s24
        %p242 = scmp.lt.s32.totalorder %s241, 0
        %s243 = scalar_select %p242, %s241, 0
        %s244 = smul.u32 2, %s243
        %s245 = ssub.s32 1, %s244
        %s246 = smul.u32 64, %s245
        %p247 = scmp.lt.s32.totalorder %s23, 1
        %s248 = scalar_select %p247, %s23, 1
        %s249 = scalar_lea.vmem %s2, %s248
        %s250 = sadd.s32 %s23, %s24
        %p251 = scmp.eq.s32.totalorder %s24, 0
        // Predicated region
        $region37: #{tpu_custom_call.1} parent=27 // pred_check
          %p252 = pneg %p251
        $region38: #{tpu_custom_call.1} parent=27 // pred_check_branch
          %254 = sbr.rel (%p252) target = $region40
        $region39: #{tpu_custom_call.1} parent=27 // pred_region
          %vm255 = vcmask 253952
          %256 = vst.msk [vmem:[#allocation2] sm:$0x1] %vm255, 0.0
        $region40: #{tpu_custom_call.1} parent=27 // pred_fallthru
          _
        %v257 = vld [vmem:[%s202] sm:$0xff]
        %v258 = vld [vmem:[%s211] sm:$0xff]
        %v259 = vlog2.pop %v257
        %v260 = vmul.f32 %v259, 0.6931472
        %v261 = vmax.f32 %v260, -100.0
        %v262 = vsub.f32 1.0, %v257
        %v263 = vlog2.pop %v262
        %v264 = vmul.f32 %v263, 0.6931472
        %v265 = vmax.f32 %v264, -100.0
        %v266 = vsub.f32 %v261, %v265
        %268 = vrot.lane.b32.xlu0 %v266, 2
        %v269 = vpop.permute.xlu0 %268
        %v271 = vmul.f32 %v258, %v269
        %273 = vrot.lane.b32.xlu0 %v271, 126
        %v274 = vpop.permute.xlu0 %273
        %v276 = vadd.f32 %v265, %v274
        %s277 = sadd.s32 %s250, 1
        %s278 = smul.u32 %s277, 8
        %p279 = scmp.le.s32.totalorder %s278, 4
        // Predicated region
        $region41: #{tpu_custom_call.1} parent=27 // pred_check
          %p280 = pneg %p279
        $region42: #{tpu_custom_call.1} parent=27 // pred_check_branch
          %282 = sbr.rel (%p280) target = $region44
        $region43: #{tpu_custom_call.1} parent=27 // pred_region
          %v283 = vld [vmem:[#allocation2] sm:$0x1]
          %vm284 = vcmask 261120
          %v285 = vsel %vm284, %v276, 0.0
          %v286 = vrot.slane %v285, 4
          %v287 = vadd.f32 %v285, %v286
          %v288 = vrot.slane %v287, 2
          %v289 = vadd.f32 %v287, %v288
          %v290 = vrot.slane %v289, 1
          %v291 = vadd.f32 %v289, %v290
          %v292 = vadd.f32 %v283, %v291
          %vm293 = vcmask 253952
          %294 = vst.msk [vmem:[#allocation2] sm:$0x1] %vm293, %v292
        $region44: #{tpu_custom_call.1} parent=27 // pred_fallthru
          _
        %p295 = scmp.gt.s32.totalorder %s278, 4
        // Predicated region
        $region45: #{tpu_custom_call.1} parent=27 // pred_check
          %p296 = pneg %p295
        $region46: #{tpu_custom_call.1} parent=27 // pred_check_branch
          %298 = sbr.rel (%p296) target = $region48
        $region47: #{tpu_custom_call.1} parent=27 // pred_region
          %v299 = vlaneseq
          %v300 = vshrl.u32 %v299, 7
          %s301 = smul.u32 %s250, 8
          %v302 = vstv %s301
          %v303 = vadd.s32 %v300, %v302
          %vm304 = vcmp.lt.s32.totalorder %v303, 4
          %v305 = vsel %vm304, %v276, 0.0
          %v306 = vld [vmem:[#allocation2] sm:$0x1]
          %vm307 = vcmask 261120
          %v308 = vsel %vm307, %v305, 0.0
          %v309 = vrot.slane %v308, 4
          %v310 = vadd.f32 %v308, %v309
          %v311 = vrot.slane %v310, 2
          %v312 = vadd.f32 %v310, %v311
          %v313 = vrot.slane %v312, 1
          %v314 = vadd.f32 %v312, %v313
          %v315 = vadd.f32 %v306, %v314
          %vm316 = vcmask 253952
          %317 = vst.msk [vmem:[#allocation2] sm:$0x1] %vm316, %v315
        $region48: #{tpu_custom_call.1} parent=27 // pred_fallthru
          _
        // Predicated region
        $region49: #{tpu_custom_call.1} parent=27 // pred_check
          %p318 = pneg %p251
        $region50: #{tpu_custom_call.1} parent=27 // pred_check_branch
          %320 = sbr.rel (%p318) target = $region52
        $region51: #{tpu_custom_call.1} parent=27 // pred_region
          %v321 = vld [vmem:[#allocation2] sm:$0x1]
          %vm322 = vcmask 253952
          %v323 = vsel %vm322, %v321, 0.0
          %324 = vadd.xlane.f32.xlu0 %v323
          %v325 = vpop.xlane.xlu0 %324
          %v326 = vrot.slane %v325, 4
          %v327 = vadd.f32 %v325, %v326
          %v328 = vrot.slane %v327, 2
          %v329 = vadd.f32 %v327, %v328
          %v330 = vrot.slane %v329, 1
          %v331 = vadd.f32 %v329, %v330
          %s332 = vtos %v331
          %v333 = vstv %s332
          %v334 = vmul.f32 %v333, -0.0078125
          %vm335 = vcmask 0
          %336 = vst.msk [vmem:[%s249] sm:$0x1] %vm335, %v334
        $region52: #{tpu_custom_call.1} parent=27 // pred_fallthru
          _
        %p337 = scmp.lt.s32.totalorder %s23, 1
        %s338 = scalar_select %p337, %s23, 1
        %s339 = scalar_lea.vmem %s2, %s338
        // Predicated region
        $region53: #{tpu_custom_call.1} parent=27 // pred_check
          %p340 = pneg %p113
        $region54: #{tpu_custom_call.1} parent=27 // pred_check_branch
          %342 = sbr.rel (%p340) target = $region56
        $region55: #{tpu_custom_call.1} parent=27 // pred_region
          _
        $region56: #{tpu_custom_call.1} parent=27 // pred_fallthru
          _
      $region28: #{tpu_custom_call.1} parent=5 // pred_fallthru
        _
      %p343 = scmp.le.s32.totalorder 2, %s14
      // Predicated region
      $region57: #{tpu_custom_call.1} parent=5 // pred_check
        %p344 = pneg %p343
      $region58: #{tpu_custom_call.1} parent=5 // pred_check_branch
        %346 = sbr.rel (%p344) target = $region60
      $region59: #{tpu_custom_call.1} parent=5 // pred_region
        %s347 = ssub.s32 %s14, 2
        // Predicated region
        $region61: #{tpu_custom_call.1} parent=59 // pred_check
          %p348 = pneg %p119
        $region62: #{tpu_custom_call.1} parent=59 // pred_check_branch
          %350 = sbr.rel (%p348) target = $region64
        $region63: #{tpu_custom_call.1} parent=59 // pred_region
          %p351 = scmp.lt.s32.totalorder %s25, 1
          %s352 = scalar_select %p351, %s25, 1
          %s353 = scalar_lea.vmem %s2, %s352
        $region64: #{tpu_custom_call.1} parent=59 // pred_fallthru
          _
      $region60: #{tpu_custom_call.1} parent=5 // pred_fallthru
        _
    $region6: #{tpu_custom_call.1} parent=1 // loop_footer
      %s18 = sadd.s32 1, %s14
    $region7: #{tpu_custom_call.1} parent=1 // loop_footer_branch
      %13 = sbr.rel target = $region3
    $region8: #{tpu_custom_call.1} parent=1 // loop_exit
      _
    %354 = vsyncpa [#allocation4], 1
    %s355 = scalar_lea.sflag [#allocation4], 1
    %356 = vsyncpa %s355, 1
    %357 = vsyncpa [#allocation6], 1
    %s358 = scalar_lea.sflag [#allocation6], 1
    %359 = vsyncpa %s358, 1

</llo_original>
